<compile_context>
chip_gen: v6e
topology: v6e:2x2x1
jax: 0.10.0
libtpu: 0.0.40
codegen_flags: <defaults>
</compile_context>

<pallas_src>
import math

import jax
import jax.numpy as jnp
from jax import lax
from jax.experimental import pallas as pl
from jax.experimental.pallas import tpu as pltpu


def _round_up(x, m):
    return ((x + m - 1) // m) * m


def _sublane(dtype):
    """Sublane packing granularity: 8 for 4-byte dtypes, 16 for 2-byte."""
    return 8 * max(1, 4 // jnp.dtype(dtype).itemsize)


# ---------------------------------------------------------------------------
# Kernels: one grid step produces one [tile_b, tile_e] output block.
# Grid = (entity tiles, batch tiles); entity is the OUTER (slow) axis.
# ---------------------------------------------------------------------------

def _proje_nn_kernel(act_ref, ent_t_ref, o_ref):
    # act_ref: [TB, D]; ent_t_ref: [D, TE] (lane-dense); o_ref: [TB, TE]
    o_ref[...] = jnp.dot(
        act_ref[...], ent_t_ref[...],
        preferred_element_type=jnp.float32).astype(o_ref.dtype)


def _proje_nt_kernel(act_ref, ent_ref, o_ref):
    # act_ref: [TB, D]; ent_ref: [TE, D] (D multiple of 128); o_ref: [TB, TE]
    o_ref[...] = lax.dot_general(
        act_ref[...], ent_ref[...],
        dimension_numbers=(((1,), (1,)), ((), ())),   # contract on D
        preferred_element_type=jnp.float32).astype(o_ref.dtype)


def _vmem_defaults():
    """(budget_bytes, limit_bytes): generous on v5e/v6e (128 MiB VMEM),
    conservative on v7x (64 MiB per TC) or if the hardware query fails."""
    try:
        cap = int(pltpu.get_tpu_info().vmem_capacity_bytes)
    except Exception:
        cap = 64 * 1024 * 1024
    if cap >= 96 * 1024 * 1024:                      # v5e / v6e
        return 48 * 1024 * 1024, 64 * 1024 * 1024
    return 20 * 1024 * 1024, 32 * 1024 * 1024        # v7x-safe


def _pick_tile_b(batch, align, tile_e, out_bytes, cap,
                 step_overhead_bytes=500_000):
    """Choose tile_b minimising (padded output bytes + per-step overhead)."""
    b_aligned = _round_up(batch, align)
    cap = max(align, (min(cap, b_aligned) // align) * align)
    best_tb, best_cost = align, None
    for tb in range(align, cap + 1, align):
        b_pad = _round_up(b_aligned, tb)
        n_b = b_pad // tb
        cost = b_pad * tile_e * out_bytes + n_b * step_overhead_bytes
        if best_cost is None or cost < best_cost:
            best_tb, best_cost = tb, cost
    return best_tb


def make_proje_forward(entity_emb, rel_emb, hr_weighted_vector,
                       hr_combination_bias, *,
                       table_dtype=jnp.float32, out_dtype=jnp.float32,
                       tile_e=None, tile_b_cap=256, table_buffers=None,
                       vmem_budget_bytes=None, vmem_limit_bytes=None):
    """One-time setup (cached table cast/layout/pad, tile sizing).

    Returns proje_forward(hr_tlist) -> [B, entity_num] logits (out_dtype)."""
    E, D = entity_emb.shape
    assert rel_emb.shape[1] == D
    assert hr_weighted_vector.shape == (2 * D,)
    assert hr_combination_bias.shape == (D,)

    default_budget, default_limit = _vmem_defaults()
    if vmem_budget_bytes is None:
        vmem_budget_bytes = default_budget
    if vmem_limit_bytes is None:
        vmem_limit_bytes = default_limit

    dt_bytes = jnp.dtype(table_dtype).itemsize
    out_bytes = jnp.dtype(out_dtype).itemsize
    sub_in = _sublane(table_dtype)
    sub_out = _sublane(out_dtype)
    b_align = max(sub_in, sub_out)

    # NN (pre-transposed [D, E] table) when D would be lane-padded; else NT.
    use_nn = (D % 128) != 0
    n_table_buf = table_buffers if table_buffers is not None else 2

    # ---- auto-size tile_e against the VMEM budget (padding-aware) ---------
    tb_nom = _round_up(tile_b_cap, b_align)
    if tile_e is None:
        d_lane = _round_up(D, 128)     # act-block lane footprint
        d_sub = _round_up(D, sub_in)   # transposed-table sublane footprint
        fixed = 2 * _round_up(tb_nom, sub_in) * d_lane * dt_bytes      # act x2 buf
        row_bytes = (d_sub if use_nn else d_lane) * dt_bytes           # table / entity
        per_e = (n_table_buf * row_bytes
                 + 2 * _round_up(tb_nom, sub_out) * out_bytes)         # + out x2 buf
        tile_e = (vmem_budget_bytes - fixed) // max(per_e, 1)
        tile_e = max(128, (tile_e // 128) * 128)
        tile_e = min(tile_e, 8192, _round_up(E, 128))
    assert tile_e % 128 == 0
    E_pad = _round_up(E, tile_e)
    n_e = E_pad // tile_e

    # ---- cached table: cast + layout + pad done exactly once here ---------
    ent = entity_emb.astype(table_dtype)
    extra = {}
    if table_buffers is not None:
        extra["pipeline_mode"] = pl.Buffered(table_buffers)
    if use_nn:
        table = jnp.pad(ent.T, ((0, 0), (0, E_pad - E)))               # [D, E_pad]
        table_spec = pl.BlockSpec((D, tile_e), lambda i, j: (0, i), **extra)
        kernel = _proje_nn_kernel
    else:
        table = jnp.pad(ent, ((0, E_pad - E), (0, 0)))                 # [E_pad, D]
        table_spec = pl.BlockSpec((tile_e, D), lambda i, j: (i, 0), **extra)
        kernel = _proje_nt_kernel

    def _forward(hr_tlist, entity_emb_, rel_emb_, w_, b_, table_):
        B = hr_tlist.shape[0]

        # ---- hoisted preamble: tiny [B, D] elementwise work, in f32 -------
        h = jnp.take(entity_emb_, hr_tlist[:, 0], axis=0)      # [B, D]
        r = jnp.take(rel_emb_, hr_tlist[:, 1], axis=0)         # [B, D]
        act = jnp.tanh(h * w_[:D] + r * w_[D:] + b_)           # [B, D]
        # TODO(synk): training-mode dropout (self.hrt_dropout) omitted; eval-mode identity.
        act = act.astype(table_dtype)

        tile_b = _pick_tile_b(B, b_align, tile_e, out_bytes, tile_b_cap)
        B_pad = _round_up(B, tile_b)
        if B_pad != B:
            act = jnp.pad(act, ((0, B_pad - B), (0, 0)))
        n_b = B_pad // tile_b

        cost = pl.CostEstimate(
            flops=2 * B_pad * D * E_pad,
            transcendentals=0,
            bytes_accessed=(E_pad * D * dt_bytes             # table: streamed once
                            + n_e * B_pad * D * dt_bytes     # act re-read per entity tile
                            + B_pad * E_pad * out_bytes))    # output written once

        out = pl.pallas_call(
            kernel,
            out_shape=jax.ShapeDtypeStruct((B_pad, E_pad), out_dtype),
            grid_spec=pltpu.PrefetchScalarGridSpec(
                num_scalar_prefetch=0,
                grid=(n_e, n_b),                              # entity OUTER, batch inner
                in_specs=[
                    pl.BlockSpec((tile_b, D), lambda i, j: (j, 0)),   # activations
                    table_spec,                                        # entity table tile
                ],
                out_specs=pl.BlockSpec((tile_b, tile_e), lambda i, j: (j, i)),
            ),
            compiler_params=pltpu.CompilerParams(
                dimension_semantics=("parallel", "parallel"),  # megacore-sharded on v7x
                vmem_limit_bytes=vmem_limit_bytes),
            cost_estimate=cost,
        )(act, table_)
        return out[:B, :E]

    forward_jit = jax.jit(_forward)

    def proje_forward(hr_tlist):
        return forward_jit(hr_tlist, entity_emb, rel_emb,
                           hr_weighted_vector, hr_combination_bias, table)

    return proje_forward


if __name__ == "__main__":
    # Small, deterministic synthetic config consistent with the module.
    embed_dim = 32
    entity_num = 256
    relation_num = 16
    batch = 8

    bound = 6.0 / math.sqrt(embed_dim)
    key = jax.random.PRNGKey(0)
    k1, k2, k3, k4, k5, k6 = jax.random.split(key, 6)

    entity_emb = jax.random.uniform(
        k1, (entity_num, embed_dim), jnp.float32, minval=-bound, maxval=bound)
    rel_emb = jax.random.uniform(
        k2, (relation_num, embed_dim), jnp.float32, minval=-bound, maxval=bound)
    hr_weighted_vector = jax.random.uniform(
        k3, (embed_dim * 2,), jnp.float32, minval=-bound, maxval=bound)
    hr_combination_bias = jax.random.uniform(
        k4, (embed_dim,), jnp.float32, minval=-bound, maxval=bound)

    hr_tlist = jnp.stack(
        [jax.random.randint(k5, (batch,), 0, entity_num, dtype=jnp.int32),
         jax.random.randint(k6, (batch,), 0, relation_num, dtype=jnp.int32)],
        axis=1)  # [B, 2]

    def reference(hr):
        h = entity_emb[hr[:, 0]]
        r = rel_emb[hr[:, 1]]
        hrv = (h * hr_weighted_vector[:embed_dim]
               + r * hr_weighted_vector[embed_dim:])
        return jnp.tanh(hrv + hr_combination_bias) @ entity_emb.T

    # ---- f32 table / f32 output (tight check) -----------------------------
    fwd_f32 = make_proje_forward(entity_emb, rel_emb, hr_weighted_vector,
                                 hr_combination_bias,
                                 table_dtype=jnp.float32, out_dtype=jnp.float32)
    out_f32 = jax.block_until_ready(fwd_f32(hr_tlist))
    ref = reference(hr_tlist)
    assert out_f32.shape == (batch, entity_num)
    assert jnp.max(jnp.abs(out_f32 - ref)) < 5e-4

    # ---- odd batch size exercising the batch-padding path -----------------
    batch2 = 20
    hr_tlist2 = jnp.stack(
        [jax.random.randint(jax.random.fold_in(k5, 1), (batch2,), 0,
                            entity_num, dtype=jnp.int32),
         jax.random.randint(jax.random.fold_in(k6, 1), (batch2,), 0,
                            relation_num, dtype=jnp.int32)],
        axis=1)
    out2 = jax.block_until_ready(fwd_f32(hr_tlist2))
    ref2 = reference(hr_tlist2)
    assert out2.shape == (batch2, entity_num)
    assert jnp.max(jnp.abs(out2 - ref2)) < 5e-4

    # ---- bf16 table + bf16 output (halved HBM streams; looser check) ------
    fwd_bf16 = make_proje_forward(entity_emb, rel_emb, hr_weighted_vector,
                                  hr_combination_bias,
                                  table_dtype=jnp.bfloat16,
                                  out_dtype=jnp.bfloat16)
    out_bf16 = jax.block_until_ready(fwd_bf16(hr_tlist))
    assert out_bf16.shape == (batch, entity_num)
    assert out_bf16.dtype == jnp.bfloat16
    assert jnp.max(jnp.abs(out_bf16.astype(jnp.float32) - ref)) < 2e-1

    print("KERNEL_OK")
</pallas_src>

<mosaic_0001>
module attributes {stable_mosaic.version = 11 : i64} {
  func.func @_proje_nn_kernel(%arg0: i32, %arg1: i32, %arg2: memref<8x32xf32, #tpu.memory_space<vmem>>, %arg3: memref<32x256xf32, #tpu.memory_space<vmem>>, %arg4: memref<8x256xf32, #tpu.memory_space<vmem>>) attributes {dimension_semantics = [#tpu.dimension_semantics<parallel>, #tpu.dimension_semantics<parallel>], iteration_bounds = array<i64: 1, 1>, scalar_prefetch = 0 : i64, scratch_operands = 0 : i64, tpu.core_type = #tpu.core_type<tc>, window_params = [{transform_indices = @transform_0, window_bounds = array<i64: 8, 32>}, {transform_indices = @transform_1, window_bounds = array<i64: 32, 256>}, {transform_indices = @transform_2, window_bounds = array<i64: 8, 256>}]} {
    %c0 = arith.constant 0 : index
    %c0_0 = arith.constant 0 : index
    %0 = vector.load %arg2[%c0, %c0_0] : memref<8x32xf32, #tpu.memory_space<vmem>>, vector<8x32xf32>
    %c0_1 = arith.constant 0 : index
    %c0_2 = arith.constant 0 : index
    %1 = vector.load %arg3[%c0_1, %c0_2] : memref<32x256xf32, #tpu.memory_space<vmem>>, vector<32x256xf32>
    %cst = arith.constant dense<0.000000e+00> : vector<8x256xf32>
    %2 = tpu.matmul %0, %1, %cst {dimension_numbers = #tpu.dot_dimension_numbers<[1], [0], [0], [1], [0, 0, 1, 1], [], []>} : vector<8x32xf32>, vector<32x256xf32>, vector<8x256xf32> -> vector<8x256xf32>
    %c0_3 = arith.constant 0 : index
    %c0_4 = arith.constant 0 : index
    %3 = vector.load %arg4[%c0_3, %c0_4] : memref<8x256xf32, #tpu.memory_space<vmem>>, vector<8x256xf32>
    tpu.vector_store %arg4[%c0_3, %c0_4], %2 {strides = array<i32>} : memref<8x256xf32, #tpu.memory_space<vmem>>, vector<8x256xf32>,
    return
  }
  func.func @transform_0(%arg0: i32, %arg1: i32) -> (i32, i32) {
    %c0_i32 = arith.constant 0 : i32
    %c0_i32_0 = arith.constant 0 : i32
    return %arg1, %c0_i32 : i32, i32
  }
  func.func @transform_1(%arg0: i32, %arg1: i32) -> (i32, i32) {
    %c0_i32 = arith.constant 0 : i32
    %c0_i32_0 = arith.constant 0 : i32
    return %c0_i32, %arg0 : i32, i32
  }
  func.func @transform_2(%arg0: i32, %arg1: i32) -> (i32, i32) {
    %c0_i32 = arith.constant 0 : i32
    return %arg1, %arg0 : i32, i32
  }
}

</mosaic_0001>

<llo_original>
// kernel: _forward.1
$region0: #{_forward.1}
  #allocation0 [shape = 'u32[]', space=smem, size = 0x4, offset = 0x4, fixed_abs, tag = 'smem constant byte address 0x4 - core index']
  #allocation1 [shape = 'u32[144,128]{1,0:T(1,128)}', space=vmem, size = 0x12000, scoped, tag = 'internal scratch']
  %s0 = inlined_call_operand.vmem [shape: f32[8,32], index: 0, kind: input, shape index: {}]
  %s1 = inlined_call_operand.vmem [shape: f32[32,256], index: 1, kind: input, shape index: {}]
  %s2 = inlined_call_operand.hbm [shape: f32[8,256], index: 2, kind: output, shape index: {}]
  %s3 = sld [smem:[#allocation0]]
  $region18: #{_forward.1} parent=0
    _
  %s5 = ssub.s32 1, %s3
  %s6 = scalar_select 0, %s5, %s3
  $region1: #{_forward.1} parent=0
    #allocation2 [shape = 'u8[8192]{0}', space=vmem, size = 0x2000, scoped, tag = 'output window, operand 0, single buffered']
    #allocation3 [shape = 's32[1]{0}', space=sflag, size = 0x4, scoped, tag = 'scoped memory for _forward.1']
    %7 = vsyncpa [#allocation3], 0
    // Predicated region
    $region2: #{_forward.1} parent=1 // pred_check
      _
    $region3: #{_forward.1} parent=1 // pred_check_branch
      %9 = sbr.rel (0) target = $region5
    $region4: #{_forward.1} parent=1 // pred_region
      _
    $region5: #{_forward.1} parent=1 // pred_fallthru
      _
    // Predicated region
    $region6: #{_forward.1} parent=1 // pred_check
      _
    $region7: #{_forward.1} parent=1 // pred_check_branch
      %11 = sbr.rel (0) target = $region9
    $region8: #{_forward.1} parent=1 // pred_region
      _
    $region9: #{_forward.1} parent=1 // pred_fallthru
      _
    %v12 = vld [vmem:[%s0] sm:$0xff]
    %v13 = vld [vmem:[%s1] sm:$0xff]
    %v14 = vld [vmem:[%s1 + $0x8] sm:$0xff]
    %v15 = vld [vmem:[%s1 + $0x10] sm:$0xff]
    %v16 = vld [vmem:[%s1 + $0x18] sm:$0xff]
    %v17 = vld [vmem:[%s1 + $0x20] sm:$0xff]
    %v18 = vld [vmem:[%s1 + $0x28] sm:$0xff]
    %v19 = vld [vmem:[%s1 + $0x30] sm:$0xff]
    %v20 = vld [vmem:[%s1 + $0x38] sm:$0xff]
    %vm21 = vcmask 261120
    %v23 = vsel %vm21, %v12, 0
    %25 = vmatprep.subr.mxu0 0.0
    %26 = vmatpush1.msra.mxu0 0.0
    %27 = vmatprep.subr.mxu0 0.0
    %28 = vmatpush1.msra.mxu0 0.0
    %29 = vmatprep.subr.mxu0 0.0
    %30 = vmatpush1.msra.mxu0 0.0
    %31 = vmatprep.subr.mxu0 0.0
    %32 = vmatpush1.msra.mxu0 0.0
    %33 = vmatprep.subr.mxu0 0.0
    %34 = vmatpush1.msra.mxu0 0.0
    %35 = vmatprep.subr.mxu0 0.0
    %36 = vmatpush1.msra.mxu0 0.0
    %37 = vmatprep.subr.mxu0 0.0
    %38 = vmatpush1.msra.mxu0 0.0
    %39 = vmatprep.subr.mxu0 0.0
    %40 = vmatpush1.msra.mxu0 0.0
    %41 = vmatprep.subr.mxu0 0.0
    %42 = vmatpush1.msra.mxu0 0.0
    %43 = vmatprep.subr.mxu0 0.0
    %44 = vmatpush1.msra.mxu0 0.0
    %45 = vmatprep.subr.mxu0 0.0
    %46 = vmatpush1.msra.mxu0 0.0
    %47 = vmatprep.subr.mxu0 0.0
    %48 = vmatpush1.msra.mxu0 0.0
    %49 = vmatprep.subr.mxu0 %v20
    %50 = vmatpush1.msra.mxu0 %v19
    %51 = vmatprep.subr.mxu0 %v18
    %52 = vmatpush1.msra.mxu0 %v17
    %53 = vmatprep.subr.mxu0 %v16
    %54 = vmatpush1.msra.mxu0 %v15
    %55 = vmatprep.subr.mxu0 %v14
    %56 = vmatpush1.msra.mxu0 %v13
    %57 = vmatprep.subr.mxu0 0.0
    %58 = vmatpush2.msra.mxu0 0.0
    %59 = vmatprep.subr.mxu0 0.0
    %60 = vmatpush2.msra.mxu0 0.0
    %61 = vmatprep.subr.mxu0 0.0
    %62 = vmatpush2.msra.mxu0 0.0
    %63 = vmatprep.subr.mxu0 0.0
    %64 = vmatpush2.msra.mxu0 0.0
    %65 = vmatprep.subr.mxu0 0.0
    %66 = vmatpush2.msra.mxu0 0.0
    %67 = vmatprep.subr.mxu0 0.0
    %68 = vmatpush2.msra.mxu0 0.0
    %69 = vmatprep.subr.mxu0 0.0
    %70 = vmatpush2.msra.mxu0 0.0
    %71 = vmatprep.subr.mxu0 0.0
    %72 = vmatpush2.msra.mxu0 0.0
    %73 = vmatprep.subr.mxu0 0.0
    %74 = vmatpush2.msra.mxu0 0.0
    %75 = vmatprep.subr.mxu0 0.0
    %76 = vmatpush2.msra.mxu0 0.0
    %77 = vmatprep.subr.mxu0 0.0
    %78 = vmatpush2.msra.mxu0 0.0
    %79 = vmatprep.subr.mxu0 0.0
    %80 = vmatpush2.msra.mxu0 0.0
    %81 = vmatprep.subr.mxu0 0.0
    %82 = vmatpush2.msra.mxu0 0.0
    %83 = vmatprep.subr.mxu0 0.0
    %84 = vmatpush2.msra.mxu0 0.0
    %85 = vmatprep.subr.mxu0 0.0
    %86 = vmatpush2.msra.mxu0 0.0
    %87 = vmatprep.subr.mxu0 0.0
    %88 = vmatpush2.msra.mxu0 0.0
    %89 = vmatprep.mubr.f32.mxu0 0.0
    %90 = vmatmul.mubr.f32.gmra.mxu0 %v23
    %v91 = vpop.f32.mrf.mxu0
    %v92 = vadd.f32 0.0, %v91
    %v93 = vpop.f32.mrf.mxu0
    %v94 = vadd.f32 0.0, %v93
    %95 = vdwg.mxu0
    %96 = vst [vmem:[#allocation2] sm:$0xff] %v92
    %97 = vst [vmem:[#allocation2 + $0x8] sm:$0xff] %v94
    // Predicated region
    $region10: #{_forward.1} parent=1 // pred_check
      _
    $region11: #{_forward.1} parent=1 // pred_check_branch
      %99 = sbr.rel (0) target = $region13
    $region12: #{_forward.1} parent=1 // pred_region
      %s101 = ssub.s32 256, 256
      %102 = vsyncadd [#allocation3], %s101
      %s104 = sshll.u32 [#allocation2], 4
      %s105 = int_to_ptr.vmem [resolvable:$true] %s104
      %107 = dma.vmem_to_hbm [thread:$0]  %s105, 256, %s2, [#allocation3]
    $region13: #{_forward.1} parent=1 // pred_fallthru
      _
    // Predicated region
    $region14: #{_forward.1} parent=1 // pred_check
      _
    $region15: #{_forward.1} parent=1 // pred_check_branch
      %109 = sbr.rel (0) target = $region17
    $region16: #{_forward.1} parent=1 // pred_region
      %110 = dma.done [#allocation3], 256
    $region17: #{_forward.1} parent=1 // pred_fallthru
      _
    %111 = vsyncpa [#allocation3], 1

</llo_original>
